<compile_context>
chip_gen: v5e
topology: v5e:2x2
jax: 0.10.0
libtpu: 0.0.40
codegen_flags: <defaults>
</compile_context>

<pallas_src>
import jax
import jax.numpy as jnp
from jax import lax
from jax.experimental import pallas as pl
from jax.experimental.pallas import tpu as pltpu


def _round_up(x, m):
    return (x + m - 1) // m * m


# --------------- Stage 1: x = relu(A @ (h @ W) + b) ---------------

def _gcn_relu_kernel(a_ref, h_ref, w_ref, b_ref, x_ref, hw_ref):
    # Compute hw = h @ W once and keep it resident in VMEM scratch across row strips.
    @pl.when(pl.program_id(0) == 0)
    def _():
        hw_ref[...] = lax.dot_general(
            h_ref[...], w_ref[...],
            dimension_numbers=(((1,), (0,)), ((), ())),
            preferred_element_type=jnp.float32,
        ).astype(jnp.bfloat16)

    # Neighbor-sum aggregation for this row strip: (tm, Np) @ (Np, Hp) -> (tm, Hp)
    agg = lax.dot_general(
        a_ref[...], hw_ref[...],
        dimension_numbers=(((1,), (0,)), ((), ())),
        preferred_element_type=jnp.float32,
    )
    x_ref[...] = jnp.maximum(agg + b_ref[...], 0.0).astype(jnp.bfloat16)


def _gcn_relu(a_bf, h_bf, w_bf, b_f32, *, tm):
    np_, fp = h_bf.shape
    hp = w_bf.shape[1]
    flops = 2 * np_ * fp * hp + 2 * np_ * np_ * hp
    bytes_accessed = 2 * (np_ * np_ + np_ * fp + fp * hp + np_ * hp) + 4 * hp
    return pl.pallas_call(
        _gcn_relu_kernel,
        out_shape=jax.ShapeDtypeStruct((np_, hp), jnp.bfloat16),
        grid=(np_ // tm,),
        in_specs=[
            pl.BlockSpec((tm, np_), lambda i: (i, 0)),   # A row strip
            pl.BlockSpec((np_, fp), lambda i: (0, 0)),   # h (resident, same block every step)
            pl.BlockSpec((fp, hp), lambda i: (0, 0)),    # W
            pl.BlockSpec((1, hp), lambda i: (0, 0)),     # bias (f32)
        ],
        out_specs=pl.BlockSpec((tm, hp), lambda i: (i, 0)),
        scratch_shapes=[pltpu.VMEM((np_, hp), jnp.bfloat16)],
        compiler_params=pltpu.CompilerParams(
            # "arbitrary": hw scratch is initialized at step 0 and reused sequentially.
            dimension_semantics=("arbitrary",),
            vmem_limit_bytes=64 * 1024 * 1024,
        ),
        cost_estimate=pl.CostEstimate(
            flops=flops, transcendentals=0, bytes_accessed=bytes_accessed),
    )(a_bf, h_bf, w_bf, b_f32)


# --------------- Stage 2: out = x @ x.T (tiled Gram matrix) ---------------

def _gram_kernel(xl_ref, xr_ref, out_ref):
    # Contract the hidden dim of both operands directly -- no explicit transpose.
    out_ref[...] = lax.dot_general(
        xl_ref[...], xr_ref[...],
        dimension_numbers=(((1,), (1,)), ((), ())),
        preferred_element_type=jnp.float32,
    )


def _gram(x_bf, *, tm, tn):
    np_, hp = x_bf.shape
    flops = 2 * np_ * np_ * hp
    bytes_accessed = 2 * 2 * np_ * hp + 4 * np_ * np_
    return pl.pallas_call(
        _gram_kernel,
        out_shape=jax.ShapeDtypeStruct((np_, np_), jnp.float32),
        grid=(np_ // tm, np_ // tn),
        in_specs=[
            pl.BlockSpec((tm, hp), lambda i, j: (i, 0)),  # row strip i of x
            pl.BlockSpec((tn, hp), lambda i, j: (j, 0)),  # row strip j of x
        ],
        out_specs=pl.BlockSpec((tm, tn), lambda i, j: (i, j)),
        compiler_params=pltpu.CompilerParams(
            dimension_semantics=("parallel", "parallel"),  # megacore sharding on v7x
            vmem_limit_bytes=64 * 1024 * 1024,
        ),
        cost_estimate=pl.CostEstimate(
            flops=flops, transcendentals=0, bytes_accessed=bytes_accessed),
    )(x_bf, x_bf)


# --------------- Wrapper ---------------

def structure_decoder(adj, h, weight, bias):
    """adj: (N, N) dense 0/1 aggregation matrix, h: (N, F_in), weight: (F_in, nhid),
    bias: (nhid,). Returns (N, N) f32 = relu(adj @ (h @ weight) + bias) @ (...)^T."""
    n, f_in = h.shape
    nhid = weight.shape[1]

    # Pad every lane dim up to a multiple of 128; zero padding is exact w.r.t. the
    # [:n, :n] result (padded bias lanes are 0, padded A columns are 0, etc.).
    np_ = _round_up(n, 128)
    fp = _round_up(f_in, 128)
    hp = _round_up(nhid, 128)

    a_bf = jnp.zeros((np_, np_), jnp.bfloat16).at[:n, :n].set(adj.astype(jnp.bfloat16))
    h_bf = jnp.zeros((np_, fp), jnp.bfloat16).at[:n, :f_in].set(h.astype(jnp.bfloat16))
    w_bf = jnp.zeros((fp, hp), jnp.bfloat16).at[:f_in, :nhid].set(weight.astype(jnp.bfloat16))
    b_f32 = jnp.zeros((1, hp), jnp.float32).at[0, :nhid].set(bias.astype(jnp.float32))

    tm = 256 if np_ % 256 == 0 else 128

    x_bf = _gcn_relu(a_bf, h_bf, w_bf, b_f32, tm=tm)
    # Dropout: identity at inference.
    out = _gram(x_bf, tm=tm, tn=tm)
    return out[:n, :n]


if __name__ == "__main__":
    # Small shapes consistent with the module: nhid=32, view_num=2 -> F_in = 64
    N = 64          # number of graph nodes
    NHID = 32
    VIEW_NUM = 2
    F_IN = NHID * VIEW_NUM

    key = jax.random.PRNGKey(0)
    k_adj, k_h, k_w, k_b = jax.random.split(key, 4)

    # Deterministic random symmetric adjacency (with self-loops), dense f32.
    rand = jax.random.uniform(k_adj, (N, N))
    adj = (rand + rand.T > 1.4).astype(jnp.float32)
    adj = jnp.maximum(adj, jnp.eye(N, dtype=jnp.float32))

    # Node features and GraphConv parameters (deterministic init).
    h = jax.random.normal(k_h, (N, F_IN), dtype=jnp.float32)
    weight = jax.random.normal(k_w, (F_IN, NHID), dtype=jnp.float32) * (1.0 / jnp.sqrt(F_IN))
    bias = jax.random.normal(k_b, (NHID,), dtype=jnp.float32) * 0.01

    out = structure_decoder(adj, h, weight, bias)
    out = jax.block_until_ready(out)

    # Reference in plain JAX replicating the same bf16-input / f32-accumulate path.
    h_bf = h.astype(jnp.bfloat16)
    w_bf = weight.astype(jnp.bfloat16)
    a_bf = adj.astype(jnp.bfloat16)
    hw = jnp.dot(h_bf, w_bf, preferred_element_type=jnp.float32).astype(jnp.bfloat16)
    x_ref = jnp.maximum(
        jnp.dot(a_bf, hw, preferred_element_type=jnp.float32) + bias[None, :], 0.0
    ).astype(jnp.bfloat16)
    ref = lax.dot_general(x_ref, x_ref, (((1,), (1,)), ((), ())),
                          preferred_element_type=jnp.float32)

    assert out.shape == (N, N)
    assert jnp.allclose(out, ref, rtol=1e-2, atol=1e-2), "mismatch vs reference"

    print("KERNEL_OK")
</pallas_src>

<mosaic_0001>
module attributes {stable_mosaic.version = 11 : i64} {
  func.func @_gcn_relu_kernel(%arg0: i32, %arg1: memref<128x128xbf16, #tpu.memory_space<vmem>>, %arg2: memref<128x128xbf16, #tpu.memory_space<vmem>>, %arg3: memref<128x128xbf16, #tpu.memory_space<vmem>>, %arg4: memref<1x128xf32, #tpu.memory_space<vmem>>, %arg5: memref<128x128xbf16, #tpu.memory_space<vmem>>, %arg6: memref<128x128xbf16, #tpu.memory_space<vmem>>) attributes {dimension_semantics = [#tpu.dimension_semantics<arbitrary>], iteration_bounds = array<i64: 1>, scalar_prefetch = 0 : i64, scratch_operands = 1 : i64, tpu.core_type = #tpu.core_type<tc>, window_params = [{transform_indices = @transform_0, window_bounds = array<i64: 128, 128>}, {pipeline_mode = #tpu.pipeline_mode<synchronous>, transform_indices = @transform_1, window_bounds = array<i64: 128, 128>}, {pipeline_mode = #tpu.pipeline_mode<synchronous>, transform_indices = @transform_2, window_bounds = array<i64: 128, 128>}, {pipeline_mode = #tpu.pipeline_mode<synchronous>, transform_indices = @transform_3, window_bounds = array<i64: 1, 128>}, {transform_indices = @transform_4, window_bounds = array<i64: 128, 128>}]} {
    %c0_i32 = arith.constant 0 : i32
    %0 = arith.cmpi eq, %arg0, %c0_i32 : i32
    %1 = arith.extui %0 : i1 to i32
    %c0_i32_0 = arith.constant 0 : i32
    %2 = arith.cmpi ne, %1, %c0_i32_0 : i32
    scf.if %2 {
      %c0_9 = arith.constant 0 : index
      %c0_10 = arith.constant 0 : index
      %13 = vector.load %arg2[%c0_9, %c0_10] : memref<128x128xbf16, #tpu.memory_space<vmem>>, vector<128x128xbf16>
      %c0_11 = arith.constant 0 : index
      %c0_12 = arith.constant 0 : index
      %14 = vector.load %arg3[%c0_11, %c0_12] : memref<128x128xbf16, #tpu.memory_space<vmem>>, vector<128x128xbf16>
      %cst_13 = arith.constant dense<0.000000e+00> : vector<128x128xf32>
      %15 = tpu.matmul %13, %14, %cst_13 {dimension_numbers = #tpu.dot_dimension_numbers<[1], [0], [0], [1], [0, 0, 1, 1], [], []>} : vector<128x128xbf16>, vector<128x128xbf16>, vector<128x128xf32> -> vector<128x128xf32>
      %16 = arith.truncf %15 : vector<128x128xf32> to vector<128x128xbf16>
      %c0_14 = arith.constant 0 : index
      %c0_15 = arith.constant 0 : index
      %17 = vector.load %arg6[%c0_14, %c0_15] : memref<128x128xbf16, #tpu.memory_space<vmem>>, vector<128x128xbf16>
      tpu.vector_store %arg6[%c0_14, %c0_15], %16 {strides = array<i32>} : memref<128x128xbf16, #tpu.memory_space<vmem>>, vector<128x128xbf16>,
    } else {
    }
    %c0 = arith.constant 0 : index
    %c0_1 = arith.constant 0 : index
    %3 = vector.load %arg1[%c0, %c0_1] : memref<128x128xbf16, #tpu.memory_space<vmem>>, vector<128x128xbf16>
    %c0_2 = arith.constant 0 : index
    %c0_3 = arith.constant 0 : index
    %4 = vector.load %arg6[%c0_2, %c0_3] : memref<128x128xbf16, #tpu.memory_space<vmem>>, vector<128x128xbf16>
    %cst = arith.constant dense<0.000000e+00> : vector<128x128xf32>
    %5 = tpu.matmul %3, %4, %cst {dimension_numbers = #tpu.dot_dimension_numbers<[1], [0], [0], [1], [0, 0, 1, 1], [], []>} : vector<128x128xbf16>, vector<128x128xbf16>, vector<128x128xf32> -> vector<128x128xf32>
    %c0_4 = arith.constant 0 : index
    %c0_5 = arith.constant 0 : index
    %6 = vector.load %arg4[%c0_4, %c0_5] : memref<1x128xf32, #tpu.memory_space<vmem>>, vector<1x128xf32>
    %7 = vector.broadcast %6 : vector<1x128xf32> to vector<128x128xf32>
    %8 = arith.addf %5, %7 : vector<128x128xf32>
    %cst_6 = arith.constant 0.000000e+00 : f32
    %9 = vector.broadcast %cst_6 : f32 to vector<128x128xf32>
    %10 = arith.maximumf %8, %9 : vector<128x128xf32>
    %11 = arith.truncf %10 : vector<128x128xf32> to vector<128x128xbf16>
    %c0_7 = arith.constant 0 : index
    %c0_8 = arith.constant 0 : index
    %12 = vector.load %arg5[%c0_7, %c0_8] : memref<128x128xbf16, #tpu.memory_space<vmem>>, vector<128x128xbf16>
    tpu.vector_store %arg5[%c0_7, %c0_8], %11 {strides = array<i32>} : memref<128x128xbf16, #tpu.memory_space<vmem>>, vector<128x128xbf16>,
    return
  }
  func.func @transform_0(%arg0: i32) -> (i32, i32) {
    %c0_i32 = arith.constant 0 : i32
    %c0_i32_0 = arith.constant 0 : i32
    return %arg0, %c0_i32 : i32, i32
  }
  func.func @transform_1(%arg0: i32) -> (i32, i32) {
    %c0_i32 = arith.constant 0 : i32
    %c0_i32_0 = arith.constant 0 : i32
    %c0_i32_1 = arith.constant 0 : i32
    return %c0_i32, %c0_i32_0 : i32, i32
  }
  func.func @transform_2(%arg0: i32) -> (i32, i32) {
    %c0_i32 = arith.constant 0 : i32
    %c0_i32_0 = arith.constant 0 : i32
    %c0_i32_1 = arith.constant 0 : i32
    return %c0_i32, %c0_i32_0 : i32, i32
  }
  func.func @transform_3(%arg0: i32) -> (i32, i32) {
    %c0_i32 = arith.constant 0 : i32
    %c0_i32_0 = arith.constant 0 : i32
    %c0_i32_1 = arith.constant 0 : i32
    return %c0_i32, %c0_i32_0 : i32, i32
  }
  func.func @transform_4(%arg0: i32) -> (i32, i32) {
    %c0_i32 = arith.constant 0 : i32
    %c0_i32_0 = arith.constant 0 : i32
    return %arg0, %c0_i32 : i32, i32
  }
}

</mosaic_0001>

<llo_original>
// kernel: tpu_custom_call.1
$region0: #{tpu_custom_call.1}
  #allocation0 [shape = 'u32[]', space=smem, size = 0x4, offset = 0x4, fixed_abs, tag = 'smem constant byte address 0x4 - core index']
  #allocation1 [shape = 'u32[72,128]{1,0:T(1,128)}', space=vmem, size = 0x9000, scoped, tag = 'internal scratch']
  #allocation2 [shape = 'bf16[128,128]{1,0:T(8,128)(2,1)}', space=vmem, size = 0x8000, scoped, tag = 'scratch operand']
  %s0 = inlined_call_operand.hbm [shape: bf16[128,128], index: 0, kind: input, shape index: {}]
  %s1 = inlined_call_operand.hbm [shape: bf16[128,128], index: 1, kind: input, shape index: {}]
  %s2 = inlined_call_operand.hbm [shape: bf16[128,128], index: 2, kind: input, shape index: {}]
  %s3 = inlined_call_operand.vmem [shape: f32[1,128], index: 3, kind: input, shape index: {}]
  %s4 = inlined_call_operand.hbm [shape: bf16[128,128], index: 4, kind: output, shape index: {}]
  %s5 = sld [smem:[#allocation0]]
  $region42: #{tpu_custom_call.1} parent=0
    _
  %s7 = ssub.s32 1, %s5
  %s8 = scalar_select 0, %s7, %s5
  $region1: #{tpu_custom_call.1} parent=0
    #allocation3 [shape = 'u8[32768]{0}', space=vmem, size = 0x8000, scoped, tag = 'input window, operand 0, single buffered']
    #allocation4 [shape = 's32[1]{0}', space=sflag, size = 0x4, scoped, tag = 'scoped memory for tpu_custom_call.1']
    #allocation5 [shape = 's32[1]{0}', space=sflag, size = 0x4, scoped, tag = 'scoped memory for tpu_custom_call.1']
    #allocation6 [shape = 'u8[32768]{0}', space=vmem, size = 0x8000, scoped, tag = 'input window, operand 1, single buffered']
    #allocation7 [shape = 's32[1]{0}', space=sflag, size = 0x4, scoped, tag = 'scoped memory for tpu_custom_call.1']
    #allocation8 [shape = 'u8[32768]{0}', space=vmem, size = 0x8000, scoped, tag = 'input window, operand 2, single buffered']
    #allocation9 [shape = 'u8[32768]{0}', space=vmem, size = 0x8000, scoped, tag = 'output window, operand 0, single buffered']
    %9 = vsyncpa [#allocation4], 0
    %10 = vsyncpa [#allocation7], 0
    %11 = vsyncpa [#allocation5], 0
    // Predicated region
    $region2: #{tpu_custom_call.1} parent=1 // pred_check
      _
    $region3: #{tpu_custom_call.1} parent=1 // pred_check_branch
      %13 = sbr.rel (0) target = $region5
    $region4: #{tpu_custom_call.1} parent=1 // pred_region
      %15 = vsyncadd [#allocation4], 0
      %s16 = sshll.u32 %s0, 4
      %s17 = int_to_ptr.hbm [resolvable:$true] %s16
      %s18 = sshll.u32 [#allocation3], 4
      %s19 = int_to_ptr.vmem [resolvable:$true] %s18
      %24 = dma.hbm_to_vmem [thread:$0]  %s17, 1024, %s19, [#allocation4], 64, 64, 4
    $region5: #{tpu_custom_call.1} parent=1 // pred_fallthru
      _
    // Predicated region
    $region6: #{tpu_custom_call.1} parent=1 // pred_check
      _
    $region7: #{tpu_custom_call.1} parent=1 // pred_check_branch
      %26 = sbr.rel (0) target = $region9
    $region8: #{tpu_custom_call.1} parent=1 // pred_region
      %28 = vsyncadd [#allocation7], 0
      %s29 = sshll.u32 %s1, 4
      %s30 = int_to_ptr.hbm [resolvable:$true] %s29
      %s31 = sshll.u32 [#allocation6], 4
      %s32 = int_to_ptr.vmem [resolvable:$true] %s31
      %37 = dma.hbm_to_vmem [thread:$0]  %s30, 1024, %s32, [#allocation7], 64, 64, 4
    $region9: #{tpu_custom_call.1} parent=1 // pred_fallthru
      _
    // Predicated region
    $region10: #{tpu_custom_call.1} parent=1 // pred_check
      _
    $region11: #{tpu_custom_call.1} parent=1 // pred_check_branch
      %39 = sbr.rel (0) target = $region13
    $region12: #{tpu_custom_call.1} parent=1 // pred_region
      %41 = vsyncadd [#allocation7], 0
      %s42 = sshll.u32 %s2, 4
      %s43 = int_to_ptr.hbm [resolvable:$true] %s42
      %s44 = sshll.u32 [#allocation8], 4
      %s45 = int_to_ptr.vmem [resolvable:$true] %s44
      %50 = dma.hbm_to_vmem [thread:$0]  %s43, 1024, %s45, [#allocation7], 64, 64, 4
    $region13: #{tpu_custom_call.1} parent=1 // pred_fallthru
      _
    // Predicated region
    $region14: #{tpu_custom_call.1} parent=1 // pred_check
      _
    $region15: #{tpu_custom_call.1} parent=1 // pred_check_branch
      %52 = sbr.rel (0) target = $region17
    $region16: #{tpu_custom_call.1} parent=1 // pred_region
      _
    $region17: #{tpu_custom_call.1} parent=1 // pred_fallthru
      _
    // Predicated region
    $region18: #{tpu_custom_call.1} parent=1 // pred_check
      _
    $region19: #{tpu_custom_call.1} parent=1 // pred_check_branch
      %54 = sbr.rel (0) target = $region21
    $region20: #{tpu_custom_call.1} parent=1 // pred_region
      %56 = dma.done [#allocation4], 1024
    $region21: #{tpu_custom_call.1} parent=1 // pred_fallthru
      _
    // Predicated region
    $region22: #{tpu_custom_call.1} parent=1 // pred_check
      _
    $region23: #{tpu_custom_call.1} parent=1 // pred_check_branch
      %58 = sbr.rel (0) target = $region25
    $region24: #{tpu_custom_call.1} parent=1 // pred_region
      %60 = dma.done [#allocation7], 1024
    $region25: #{tpu_custom_call.1} parent=1 // pred_fallthru
      _
    // Predicated region
    $region26: #{tpu_custom_call.1} parent=1 // pred_check
      _
    $region27: #{tpu_custom_call.1} parent=1 // pred_check_branch
      %62 = sbr.rel (0) target = $region29
    $region28: #{tpu_custom_call.1} parent=1 // pred_region
      %64 = dma.done [#allocation7], 1024
    $region29: #{tpu_custom_call.1} parent=1 // pred_fallthru
      _
    %p65 = scmp.eq.s32.totalorder 0, 0
    // Predicated region
    $region30: #{tpu_custom_call.1} parent=1 // pred_check
      %p66 = pneg %p65
    $region31: #{tpu_custom_call.1} parent=1 // pred_check_branch
      %68 = sbr.rel (%p66) target = $region33
    $region32: #{tpu_custom_call.1} parent=1 // pred_region
      %v69 = vld [vmem:[#allocation6] sm:$0xf]
      %v70 = vld [vmem:[#allocation6 + $0x4] sm:$0xf]
      %v71 = vld [vmem:[#allocation6 + $0x8] sm:$0xf]
      %v72 = vld [vmem:[#allocation6 + $0xc] sm:$0xf]
      %v73 = vld [vmem:[#allocation6 + $0x10] sm:$0xf]
      %v74 = vld [vmem:[#allocation6 + $0x14] sm:$0xf]
      %v75 = vld [vmem:[#allocation6 + $0x18] sm:$0xf]
      %v76 = vld [vmem:[#allocation6 + $0x1c] sm:$0xf]
      %v77 = vld [vmem:[#allocation6 + $0x20] sm:$0xf]
      %v78 = vld [vmem:[#allocation6 + $0x24] sm:$0xf]
      %v79 = vld [vmem:[#allocation6 + $0x28] sm:$0xf]
      %v80 = vld [vmem:[#allocation6 + $0x2c] sm:$0xf]
      %v81 = vld [vmem:[#allocation6 + $0x30] sm:$0xf]
      %v82 = vld [vmem:[#allocation6 + $0x34] sm:$0xf]
      %v83 = vld [vmem:[#allocation6 + $0x38] sm:$0xf]
      %v84 = vld [vmem:[#allocation6 + $0x3c] sm:$0xf]
      %v85 = vld [vmem:[#allocation8] sm:$0xf]
      %v86 = vld [vmem:[#allocation8 + $0x4] sm:$0xf]
      %v87 = vld [vmem:[#allocation8 + $0x8] sm:$0xf]
      %v88 = vld [vmem:[#allocation8 + $0xc] sm:$0xf]
      %v89 = vld [vmem:[#allocation8 + $0x10] sm:$0xf]
      %v90 = vld [vmem:[#allocation8 + $0x14] sm:$0xf]
      %v91 = vld [vmem:[#allocation8 + $0x18] sm:$0xf]
      %v92 = vld [vmem:[#allocation8 + $0x1c] sm:$0xf]
      %v93 = vld [vmem:[#allocation8 + $0x20] sm:$0xf]
      %v94 = vld [vmem:[#allocation8 + $0x24] sm:$0xf]
      %v95 = vld [vmem:[#allocation8 + $0x28] sm:$0xf]
      %v96 = vld [vmem:[#allocation8 + $0x2c] sm:$0xf]
      %v97 = vld [vmem:[#allocation8 + $0x30] sm:$0xf]
      %v98 = vld [vmem:[#allocation8 + $0x34] sm:$0xf]
      %v99 = vld [vmem:[#allocation8 + $0x38] sm:$0xf]
      %v100 = vld [vmem:[#allocation8 + $0x3c] sm:$0xf]
      %v117 = vunpack.c.l.b16 %v69
      %v118 = vunpack.c.l.b16 %v70
      %v119 = vunpack.c.l.b16 %v71
      %v120 = vunpack.c.l.b16 %v72
      %v121 = vunpack.c.l.b16 %v73
      %v122 = vunpack.c.l.b16 %v74
      %v123 = vunpack.c.l.b16 %v75
      %v124 = vunpack.c.l.b16 %v76
      %v125 = vunpack.c.l.b16 %v77
      %v126 = vunpack.c.l.b16 %v78
      %v127 = vunpack.c.l.b16 %v79
      %v128 = vunpack.c.l.b16 %v80
      %v129 = vunpack.c.l.b16 %v81
      %v130 = vunpack.c.l.b16 %v82
      %v131 = vunpack.c.l.b16 %v83
      %v132 = vunpack.c.l.b16 %v84
      %v133 = vpack.c.b16 %v118, %v117
      %v134 = vpack.c.b16 %v120, %v119
      %v135 = vpack.c.b16 %v122, %v121
      %v136 = vpack.c.b16 %v124, %v123
      %v137 = vpack.c.b16 %v126, %v125
      %v138 = vpack.c.b16 %v128, %v127
      %v139 = vpack.c.b16 %v130, %v129
      %v140 = vpack.c.b16 %v132, %v131
      %v165 = vunpack.c.l.b16 %v85
      %v166 = vunpack.c.l.b16 %v86
      %v167 = vunpack.c.l.b16 %v87
      %v168 = vunpack.c.l.b16 %v88
      %v169 = vunpack.c.l.b16 %v89
      %v170 = vunpack.c.l.b16 %v90
      %v171 = vunpack.c.l.b16 %v91
      %v172 = vunpack.c.l.b16 %v92
      %v173 = vunpack.c.l.b16 %v93
      %v174 = vunpack.c.l.b16 %v94
      %v175 = vunpack.c.l.b16 %v95
      %v176 = vunpack.c.l.b16 %v96
      %v177 = vunpack.c.l.b16 %v97
      %v178 = vunpack.c.l.b16 %v98
      %v179 = vunpack.c.l.b16 %v99
      %v180 = vunpack.c.l.b16 %v100
      %v181 = vpack.c.b16 %v166, %v165
      %v182 = vpack.c.b16 %v168, %v167
      %v183 = vpack.c.b16 %v170, %v169
      %v184 = vpack.c.b16 %v172, %v171
      %v185 = vpack.c.b16 %v174, %v173
      %v186 = vpack.c.b16 %v176, %v175
      %v187 = vpack.c.b16 %v178, %v177
      %v188 = vpack.c.b16 %v180, %v179
      %197 = vmatpush.bf16.msra.mxu0 %v188
      %198 = vmatpush.bf16.msra.mxu0 %v187
      %199 = vmatpush.bf16.msra.mxu0 %v186
      %200 = vmatpush.bf16.msra.mxu0 %v185
      %201 = vmatpush.bf16.msra.mxu0 %v184
      %202 = vmatpush.bf16.msra.mxu0 %v183
      %203 = vmatpush.bf16.msra.mxu0 %v182
      %204 = vmatpush.bf16.msra.mxu0 %v181
      %205 = vmatmul.bf16.gmra.mxu0 %v133
      %v206 = vpop.f32.mrf.mxu0
      %v207 = vadd.f32 0.0, %v206
      %v208 = vpop.f32.mrf.mxu0
      %v209 = vadd.f32 0.0, %v208
      %210 = vmatmul.bf16.gmra.mxu0 %v134
      %v211 = vpop.f32.mrf.mxu0
      %v212 = vadd.f32 0.0, %v211
      %v213 = vpop.f32.mrf.mxu0
      %v214 = vadd.f32 0.0, %v213
      %215 = vmatmul.bf16.gmra.mxu0 %v135
      %v216 = vpop.f32.mrf.mxu0
      %v217 = vadd.f32 0.0, %v216
      %v218 = vpop.f32.mrf.mxu0
      %v219 = vadd.f32 0.0, %v218
      %220 = vmatmul.bf16.gmra.mxu0 %v136
      %v221 = vpop.f32.mrf.mxu0
      %v222 = vadd.f32 0.0, %v221
      %v223 = vpop.f32.mrf.mxu0
      %v224 = vadd.f32 0.0, %v223
      %225 = vmatmul.bf16.gmra.mxu0 %v137
      %v226 = vpop.f32.mrf.mxu0
      %v227 = vadd.f32 0.0, %v226
      %v228 = vpop.f32.mrf.mxu0
      %v229 = vadd.f32 0.0, %v228
      %230 = vmatmul.bf16.gmra.mxu0 %v138
      %v231 = vpop.f32.mrf.mxu0
      %v232 = vadd.f32 0.0, %v231
      %v233 = vpop.f32.mrf.mxu0
      %v234 = vadd.f32 0.0, %v233
      %235 = vmatmul.bf16.gmra.mxu0 %v139
      %v236 = vpop.f32.mrf.mxu0
      %v237 = vadd.f32 0.0, %v236
      %v238 = vpop.f32.mrf.mxu0
      %v239 = vadd.f32 0.0, %v238
      %240 = vmatmul.bf16.gmra.mxu0 %v140
      %v241 = vpop.f32.mrf.mxu0
      %v242 = vadd.f32 0.0, %v241
      %v243 = vpop.f32.mrf.mxu0
      %v244 = vadd.f32 0.0, %v243
      %245 = vdwg.mxu0
      %v246 = vpack.c.bf16 %v207, %v207
      %v247 = vpack.c.bf16 %v209, %v209
      %v248 = vpack.c.bf16 %v212, %v212
      %v249 = vpack.c.bf16 %v214, %v214
      %v250 = vpack.c.bf16 %v217, %v217
      %v251 = vpack.c.bf16 %v219, %v219
      %v252 = vpack.c.bf16 %v222, %v222
      %v253 = vpack.c.bf16 %v224, %v224
      %v254 = vpack.c.bf16 %v227, %v227
      %v255 = vpack.c.bf16 %v229, %v229
      %v256 = vpack.c.bf16 %v232, %v232
      %v257 = vpack.c.bf16 %v234, %v234
      %v258 = vpack.c.bf16 %v237, %v237
      %v259 = vpack.c.bf16 %v239, %v239
      %v260 = vpack.c.bf16 %v242, %v242
      %v261 = vpack.c.bf16 %v244, %v244
      %262 = vst [vmem:[#allocation2] sm:$0xf] %v246
      %263 = vst [vmem:[#allocation2 + $0x4] sm:$0xf] %v247
      %264 = vst [vmem:[#allocation2 + $0x8] sm:$0xf] %v248
      %265 = vst [vmem:[#allocation2 + $0xc] sm:$0xf] %v249
      %266 = vst [vmem:[#allocation2 + $0x10] sm:$0xf] %v250
      %267 = vst [vmem:[#allocation2 + $0x14] sm:$0xf] %v251
      %268 = vst [vmem:[#allocation2 + $0x18] sm:$0xf] %v252
      %269 = vst [vmem:[#allocation2 + $0x1c] sm:$0xf] %v253
      %270 = vst [vmem:[#allocation2 + $0x20] sm:$0xf] %v254
      %271 = vst [vmem:[#allocation2 + $0x24] sm:$0xf] %v255
      %272 = vst [vmem:[#allocation2 + $0x28] sm:$0xf] %v256
      %273 = vst [vmem:[#allocation2 + $0x2c] sm:$0xf] %v257
      %274 = vst [vmem:[#allocation2 + $0x30] sm:$0xf] %v258
      %275 = vst [vmem:[#allocation2 + $0x34] sm:$0xf] %v259
      %276 = vst [vmem:[#allocation2 + $0x38] sm:$0xf] %v260
      %277 = vst [vmem:[#allocation2 + $0x3c] sm:$0xf] %v261
    $region33: #{tpu_custom_call.1} parent=1 // pred_fallthru
      _
    %v278 = vld [vmem:[#allocation3] sm:$0xf]
    %v279 = vld [vmem:[#allocation3 + $0x4] sm:$0xf]
    %v280 = vld [vmem:[#allocation3 + $0x8] sm:$0xf]
    %v281 = vld [vmem:[#allocation3 + $0xc] sm:$0xf]
    %v282 = vld [vmem:[#allocation3 + $0x10] sm:$0xf]
    %v283 = vld [vmem:[#allocation3 + $0x14] sm:$0xf]
    %v284 = vld [vmem:[#allocation3 + $0x18] sm:$0xf]
    %v285 = vld [vmem:[#allocation3 + $0x1c] sm:$0xf]
    %v286 = vld [vmem:[#allocation3 + $0x20] sm:$0xf]
    %v287 = vld [vmem:[#allocation3 + $0x24] sm:$0xf]
    %v288 = vld [vmem:[#allocation3 + $0x28] sm:$0xf]
    %v289 = vld [vmem:[#allocation3 + $0x2c] sm:$0xf]
    %v290 = vld [vmem:[#allocation3 + $0x30] sm:$0xf]
    %v291 = vld [vmem:[#allocation3 + $0x34] sm:$0xf]
    %v292 = vld [vmem:[#allocation3 + $0x38] sm:$0xf]
    %v293 = vld [vmem:[#allocation3 + $0x3c] sm:$0xf]
    %v294 = vld [vmem:[#allocation2] sm:$0xf]
    %v295 = vld [vmem:[#allocation2 + $0x4] sm:$0xf]
    %v296 = vld [vmem:[#allocation2 + $0x8] sm:$0xf]
    %v297 = vld [vmem:[#allocation2 + $0xc] sm:$0xf]
    %v298 = vld [vmem:[#allocation2 + $0x10] sm:$0xf]
    %v299 = vld [vmem:[#allocation2 + $0x14] sm:$0xf]
    %v300 = vld [vmem:[#allocation2 + $0x18] sm:$0xf]
    %v301 = vld [vmem:[#allocation2 + $0x1c] sm:$0xf]
    %v302 = vld [vmem:[#allocation2 + $0x20] sm:$0xf]
    %v303 = vld [vmem:[#allocation2 + $0x24] sm:$0xf]
    %v304 = vld [vmem:[#allocation2 + $0x28] sm:$0xf]
    %v305 = vld [vmem:[#allocation2 + $0x2c] sm:$0xf]
    %v306 = vld [vmem:[#allocation2 + $0x30] sm:$0xf]
    %v307 = vld [vmem:[#allocation2 + $0x34] sm:$0xf]
    %v308 = vld [vmem:[#allocation2 + $0x38] sm:$0xf]
    %v309 = vld [vmem:[#allocation2 + $0x3c] sm:$0xf]
    %v310 = vld [vmem:[%s3] sm:$0x1]
    %v312 = vperm.slane %v310, 0
    %v330 = vunpack.c.l.b16 %v278
    %v331 = vunpack.c.l.b16 %v279
    %v332 = vunpack.c.l.b16 %v280
    %v333 = vunpack.c.l.b16 %v281
    %v334 = vunpack.c.l.b16 %v282
    %v335 = vunpack.c.l.b16 %v283
    %v336 = vunpack.c.l.b16 %v284
    %v337 = vunpack.c.l.b16 %v285
    %v338 = vunpack.c.l.b16 %v286
    %v339 = vunpack.c.l.b16 %v287
    %v340 = vunpack.c.l.b16 %v288
    %v341 = vunpack.c.l.b16 %v289
    %v342 = vunpack.c.l.b16 %v290
    %v343 = vunpack.c.l.b16 %v291
    %v344 = vunpack.c.l.b16 %v292
    %v345 = vunpack.c.l.b16 %v293
    %v346 = vpack.c.b16 %v331, %v330
    %v347 = vpack.c.b16 %v333, %v332
    %v348 = vpack.c.b16 %v335, %v334
    %v349 = vpack.c.b16 %v337, %v336
    %v350 = vpack.c.b16 %v339, %v338
    %v351 = vpack.c.b16 %v341, %v340
    %v352 = vpack.c.b16 %v343, %v342
    %v353 = vpack.c.b16 %v345, %v344
    %v378 = vunpack.c.l.b16 %v294
    %v379 = vunpack.c.l.b16 %v295
    %v380 = vunpack.c.l.b16 %v296
    %v381 = vunpack.c.l.b16 %v297
    %v382 = vunpack.c.l.b16 %v298
    %v383 = vunpack.c.l.b16 %v299
    %v384 = vunpack.c.l.b16 %v300
    %v385 = vunpack.c.l.b16 %v301
    %v386 = vunpack.c.l.b16 %v302
    %v387 = vunpack.c.l.b16 %v303
    %v388 = vunpack.c.l.b16 %v304
    %v389 = vunpack.c.l.b16 %v305
    %v390 = vunpack.c.l.b16 %v306
    %v391 = vunpack.c.l.b16 %v307
    %v392 = vunpack.c.l.b16 %v308
    %v393 = vunpack.c.l.b16 %v309
    %v394 = vpack.c.b16 %v379, %v378
    %v395 = vpack.c.b16 %v381, %v380
    %v396 = vpack.c.b16 %v383, %v382
    %v397 = vpack.c.b16 %v385, %v384
    %v398 = vpack.c.b16 %v387, %v386
    %v399 = vpack.c.b16 %v389, %v388
    %v400 = vpack.c.b16 %v391, %v390
    %v401 = vpack.c.b16 %v393, %v392
    %410 = vmatpush.bf16.msra.mxu0 %v401
    %411 = vmatpush.bf16.msra.mxu0 %v400
    %412 = vmatpush.bf16.msra.mxu0 %v399
    %413 = vmatpush.bf16.msra.mxu0 %v398
    %414 = vmatpush.bf16.msra.mxu0 %v397
    %415 = vmatpush.bf16.msra.mxu0 %v396
    %416 = vmatpush.bf16.msra.mxu0 %v395
    %417 = vmatpush.bf16.msra.mxu0 %v394
    %418 = vmatmul.bf16.gmra.mxu0 %v346
    %v419 = vpop.f32.mrf.mxu0
    %v420 = vadd.f32 %v312, %v419
    %v421 = vpop.f32.mrf.mxu0
    %v422 = vadd.f32 %v312, %v421
    %423 = vmatmul.bf16.gmra.mxu0 %v347
    %v424 = vpop.f32.mrf.mxu0
    %v425 = vadd.f32 %v312, %v424
    %v426 = vpop.f32.mrf.mxu0
    %v427 = vadd.f32 %v312, %v426
    %428 = vmatmul.bf16.gmra.mxu0 %v348
    %v429 = vpop.f32.mrf.mxu0
    %v430 = vadd.f32 %v312, %v429
    %v431 = vpop.f32.mrf.mxu0
    %v432 = vadd.f32 %v312, %v431
    %433 = vmatmul.bf16.gmra.mxu0 %v349
    %v434 = vpop.f32.mrf.mxu0
    %v435 = vadd.f32 %v312, %v434
    %v436 = vpop.f32.mrf.mxu0
    %v437 = vadd.f32 %v312, %v436
    %438 = vmatmul.bf16.gmra.mxu0 %v350
    %v439 = vpop.f32.mrf.mxu0
    %v440 = vadd.f32 %v312, %v439
    %v441 = vpop.f32.mrf.mxu0
    %v442 = vadd.f32 %v312, %v441
    %443 = vmatmul.bf16.gmra.mxu0 %v351
    %v444 = vpop.f32.mrf.mxu0
    %v445 = vadd.f32 %v312, %v444
    %v446 = vpop.f32.mrf.mxu0
    %v447 = vadd.f32 %v312, %v446
    %448 = vmatmul.bf16.gmra.mxu0 %v352
    %v449 = vpop.f32.mrf.mxu0
    %v450 = vadd.f32 %v312, %v449
    %v451 = vpop.f32.mrf.mxu0
    %v452 = vadd.f32 %v312, %v451
    %453 = vmatmul.bf16.gmra.mxu0 %v353
    %v454 = vpop.f32.mrf.mxu0
    %v455 = vadd.f32 %v312, %v454
    %v456 = vpop.f32.mrf.mxu0
    %v457 = vadd.f32 %v312, %v456
    %458 = vdwg.mxu0
    %v459 = vmax.f32 %v420, 0.0
    %v460 = vmax.f32 %v422, 0.0
    %v461 = vmax.f32 %v425, 0.0
    %v462 = vmax.f32 %v427, 0.0
    %v463 = vmax.f32 %v430, 0.0
    %v464 = vmax.f32 %v432, 0.0
    %v465 = vmax.f32 %v435, 0.0
    %v466 = vmax.f32 %v437, 0.0
    %v467 = vmax.f32 %v440, 0.0
    %v468 = vmax.f32 %v442, 0.0
    %v469 = vmax.f32 %v445, 0.0
    %v470 = vmax.f32 %v447, 0.0
    %v471 = vmax.f32 %v450, 0.0
    %v472 = vmax.f32 %v452, 0.0
    %v473 = vmax.f32 %v455, 0.0
    %v474 = vmax.f32 %v457, 0.0
    %v475 = vpack.c.bf16 %v459, %v459
    %v476 = vpack.c.bf16 %v460, %v460
    %v477 = vpack.c.bf16 %v461, %v461
    %v478 = vpack.c.bf16 %v462, %v462
    %v479 = vpack.c.bf16 %v463, %v463
    %v480 = vpack.c.bf16 %v464, %v464
    %v481 = vpack.c.bf16 %v465, %v465
    %v482 = vpack.c.bf16 %v466, %v466
    %v483 = vpack.c.bf16 %v467, %v467
    %v484 = vpack.c.bf16 %v468, %v468
    %v485 = vpack.c.bf16 %v469, %v469
    %v486 = vpack.c.bf16 %v470, %v470
    %v487 = vpack.c.bf16 %v471, %v471
    %v488 = vpack.c.bf16 %v472, %v472
    %v489 = vpack.c.bf16 %v473, %v473
    %v490 = vpack.c.bf16 %v474, %v474
    %491 = vst [vmem:[#allocation9] sm:$0xf] %v475
    %492 = vst [vmem:[#allocation9 + $0x4] sm:$0xf] %v476
    %493 = vst [vmem:[#allocation9 + $0x8] sm:$0xf] %v477
    %494 = vst [vmem:[#allocation9 + $0xc] sm:$0xf] %v478
    %495 = vst [vmem:[#allocation9 + $0x10] sm:$0xf] %v479
    %496 = vst [vmem:[#allocation9 + $0x14] sm:$0xf] %v480
    %497 = vst [vmem:[#allocation9 + $0x18] sm:$0xf] %v481
    %498 = vst [vmem:[#allocation9 + $0x1c] sm:$0xf] %v482
    %499 = vst [vmem:[#allocation9 + $0x20] sm:$0xf] %v483
    %500 = vst [vmem:[#allocation9 + $0x24] sm:$0xf] %v484
    %501 = vst [vmem:[#allocation9 + $0x28] sm:$0xf] %v485
    %502 = vst [vmem:[#allocation9 + $0x2c] sm:$0xf] %v486
    %503 = vst [vmem:[#allocation9 + $0x30] sm:$0xf] %v487
    %504 = vst [vmem:[#allocation9 + $0x34] sm:$0xf] %v488
    %505 = vst [vmem:[#allocation9 + $0x38] sm:$0xf] %v489
    %506 = vst [vmem:[#allocation9 + $0x3c] sm:$0xf] %v490
    // Predicated region
    $region34: #{tpu_custom_call.1} parent=1 // pred_check
      _
    $region35: #{tpu_custom_call.1} parent=1 // pred_check_branch
      %508 = sbr.rel (0) target = $region37
    $region36: #{tpu_custom_call.1} parent=1 // pred_region
      %510 = vsyncadd [#allocation5], 0
      %s511 = sshll.u32 [#allocation9], 4
      %s512 = int_to_ptr.vmem [resolvable:$true] %s511
      %s513 = sshll.u32 %s4, 4
      %s514 = int_to_ptr.hbm [resolvable:$true] %s513
      %519 = dma.vmem_to_hbm [thread:$0]  %s512, 1024, %s514, [#allocation5], 64, 64, 4
    $region37: #{tpu_custom_call.1} parent=1 // pred_fallthru
      _
    // Predicated region
    $region38: #{tpu_custom_call.1} parent=1 // pred_check
      _
    $region39: #{tpu_custom_call.1} parent=1 // pred_check_branch
      %521 = sbr.rel (0) target = $region41
    $region40: #{tpu_custom_call.1} parent=1 // pred_region
      %523 = dma.done [#allocation5], 1024
    $region41: #{tpu_custom_call.1} parent=1 // pred_fallthru
      _
    %524 = vsyncpa [#allocation4], 1
    %525 = vsyncpa [#allocation7], 1
    %526 = vsyncpa [#allocation5], 1

</llo_original>
